<compile_context>
chip_gen: v7x
topology: tpu7x:2x2x1
jax: 0.10.0
libtpu: 0.0.40
codegen_flags: <defaults>
</compile_context>

<pallas_src>
import functools
import itertools

import numpy as np
import jax
import jax.numpy as jnp
from jax.experimental import pallas as pl
from jax.experimental.pallas import tpu as pltpu


# ---------------------------------------------------------------------------
# Median selection networks (elementwise compare-exchange on arrays).
# ---------------------------------------------------------------------------

# Classic 19-compare-exchange 3x3 median network (Smith / Devillard opt_med9).
_MED9_NET = (
    (1, 2), (4, 5), (7, 8), (0, 1), (3, 4), (6, 7), (1, 2), (4, 5), (7, 8),
    (0, 3), (5, 8), (4, 7), (3, 6), (1, 4), (2, 5), (4, 7), (4, 2), (6, 4),
    (4, 2),
)


def _verify_med9_net():
    """0-1-principle check of the 3x3 network (host-side, 512 binary vectors)."""
    codes = np.array(list(itertools.product((0, 1), repeat=9)), dtype=np.int32)
    cols = [codes[:, i].copy() for i in range(9)]
    for i, j in _MED9_NET:
        lo = np.minimum(cols[i], cols[j])
        hi = np.maximum(cols[i], cols[j])
        cols[i], cols[j] = lo, hi
    return bool(np.all(cols[4] == np.sort(codes, axis=1)[:, 4]))


_MED9_OK = _verify_med9_net()


def _ce(w, i, j):
    """Compare-exchange: min -> w[i], max -> w[j] (elementwise, VPU only)."""
    a, b = w[i], w[j]
    w[i] = jnp.minimum(a, b)
    w[j] = jnp.maximum(a, b)


def _drop_min_max(w):
    """Permute so w[0]=global min, w[-1]=global max, then drop both (2s-3 CEs)."""
    s = len(w)
    for i in range(s - 1):            # bubble global max to w[s-1]
        _ce(w, i, i + 1)
    for i in range(s - 2, 0, -1):     # bubble global min to w[0]
        _ce(w, i - 1, i)
    return w[1:s - 1]


def _median_of(windows):
    """Median (lower-middle == torch.median) of an odd-length list of arrays."""
    w = list(windows)
    n = len(w)
    if n == 1:
        return w[0]
    if n == 9 and _MED9_OK:
        for i, j in _MED9_NET:
            _ce(w, i, j)
        return w[4]
    # Generic odd n: forgetful selection.  Keep a working set of (n+3)//2
    # values; repeatedly drop its min & max (provably not the median of the
    # remaining multiset) and pull in the next value.  Far fewer CEs than a
    # full odd-even transposition sort.
    s0 = n // 2 + 2
    work, rest = w[:s0], w[s0:]
    for nxt in rest:
        work = _drop_min_max(work)
        work.append(nxt)
    work = _drop_min_max(work)
    return work[0]


# ---------------------------------------------------------------------------
# Pallas kernel
# ---------------------------------------------------------------------------

def _median_blur_kernel(x_ref, o_ref, *, kh, kw, th, n_strips):
    # x_ref: (hp, lin)  zero-padded, lane-folded image group (VMEM resident
    #                    across the strip axis of the grid).
    # o_ref: (th, lout) output row strip (lane-dense).
    lout = o_ref.shape[1]
    if n_strips == 1:
        xs = x_ref[...]                                   # whole padded block
    else:
        r0 = pl.multiple_of(pl.program_id(1) * th, th)
        xs = x_ref[pl.ds(r0, th + kh - 1), :]             # halo strip (aligned)
    # kh*kw shifted windows of the strip; static value slices, vreg-resident.
    windows = [xs[dy:dy + th, dx:dx + lout]
               for dy in range(kh) for dx in range(kw)]
    o_ref[...] = _median_of(windows).astype(o_ref.dtype)


def _pick_strip_height(h):
    # Row-strip height: multiple of 8 sublanes; prefer >=2 strips (v7x 2 TCs).
    for th in (32, 16, 8):
        if h % th == 0 and h // th >= 2:
            return th
    for th in (32, 16, 8):
        if h % th == 0:
            return th
    return h


def median_blur(x, kernel_size=(3, 3)):
    """Median blur of a (B, C, H, W) array; matches MedianBlur.forward."""
    assert x.ndim == 4, "expected BxCxHxW"
    if isinstance(kernel_size, int):
        kernel_size = (kernel_size, kernel_size)
    kh, kw = kernel_size
    assert kh % 2 == 1 and kw % 2 == 1, "odd kernel sizes only"
    # TODO(synk): even kernel sizes shrink the output in the reference module
    # (F.conv2d with (k-1)//2 padding); not supported here.

    b, c, h, w = x.shape
    n = b * c
    ph, pw = (kh - 1) // 2, (kw - 1) // 2
    hp, wp = h + kh - 1, w + kw - 1
    dtype = x.dtype
    itemsize = jnp.dtype(dtype).itemsize

    # ---- lane-density fold: place G padded images side by side on the lane
    # axis so the kernel operates on ~128+ lanes even when W is small.
    g = max(1, min(n, -(-128 // wp)))          # ceil(128 / wp), capped at n
    n_pad = -(-n // g) * g                     # round image count up to g
    ng = n_pad // g
    lout = g * wp                              # folded (padded) output width
    lin = lout + (kw - 1)                      # + slack so every dx slice fits

    xf = x.reshape(n, h, w)
    if n_pad != n:
        xf = jnp.concatenate([xf, jnp.zeros((n_pad - n, h, w), dtype)], axis=0)
    # (ng, g, h, w) -> (ng, hp, g, wp) zero padded -> (ng, hp, lin)
    xg = xf.reshape(ng, g, h, w).transpose(0, 2, 1, 3)
    xg = jnp.pad(xg, ((0, 0), (ph, kh - 1 - ph), (0, 0), (pw, kw - 1 - pw)))
    xg = xg.reshape(ng, hp, lout)
    xg = jnp.pad(xg, ((0, 0), (0, 0), (0, kw - 1)))
    # TODO(synk): the wrapper pad/transpose relayout is one extra HBM pass;
    # fold it into the pallas_call input (allow_input_fusion) once stable, and
    # halo-tile H in the grid for images whose padded group exceeds v7x VMEM.

    th = _pick_strip_height(h)
    n_strips = h // th

    kernel = functools.partial(
        _median_blur_kernel, kh=kh, kw=kw, th=th, n_strips=n_strips)

    # VMEM budget for the chosen tile (double-buffered in + out blocks + slack).
    block_bytes = (hp * lin + th * lout) * itemsize
    vmem_bytes = int(max(4 * block_bytes + (1 << 20), 16 << 20))

    out = pl.pallas_call(
        kernel,
        out_shape=jax.ShapeDtypeStruct((ng, h, lout), dtype),
        grid_spec=pltpu.PrefetchScalarGridSpec(
            num_scalar_prefetch=0,
            grid=(ng, n_strips),
            in_specs=[pl.BlockSpec((None, hp, lin), lambda i, j: (i, 0, 0))],
            out_specs=pl.BlockSpec((None, th, lout), lambda i, j: (i, j, 0)),
        ),
        compiler_params=pltpu.CompilerParams(
            dimension_semantics=("parallel", "parallel"),
            vmem_limit_bytes=vmem_bytes,
        ),
    )(xg)

    # ---- unfold: (ng, h, g*wp) -> (n, h, w), dropping per-image pad columns.
    out = out.reshape(ng, h, g, wp)[:, :, :, :w]
    out = out.transpose(0, 2, 1, 3).reshape(n_pad, h, w)[:n]
    return out.reshape(b, c, h, w)


# ---------------------------------------------------------------------------
# Pure-JAX reference mirroring the PyTorch module (conv2d patch extract + median)
# ---------------------------------------------------------------------------

def _median_blur_ref(x, kernel_size=(3, 3)):
    b, c, h, w = x.shape
    kh, kw = kernel_size
    ph, pw = (kh - 1) // 2, (kw - 1) // 2
    xp = jnp.pad(x, ((0, 0), (0, 0), (ph, kh - 1 - ph), (pw, kw - 1 - pw)))
    patches = jnp.stack(
        [xp[:, :, dy:dy + h, dx:dx + w]
         for dy in range(kh) for dx in range(kw)], axis=2)
    nn = kh * kw
    return jnp.sort(patches, axis=2)[:, :, (nn - 1) // 2]


if __name__ == "__main__":
    key0, key1 = jax.random.split(jax.random.PRNGKey(0))

    # Primary case: (B, C, H, W) = (2, 4, 16, 16), 3x3 median (19-CE network,
    # 8 images folded into 144 lanes, grid (1 group, 2 row strips)).
    x = jax.random.uniform(key0, (2, 4, 16, 16), dtype=jnp.float32)
    out = jax.block_until_ready(median_blur(x, kernel_size=(3, 3)))
    ref = _median_blur_ref(x, kernel_size=(3, 3))
    assert out.shape == (2, 4, 16, 16)
    assert jnp.allclose(out, ref, atol=1e-6), "3x3 mismatch vs reference"

    # Secondary case exercising the generic forgetful-selection path: 5x5.
    x2 = jax.random.uniform(key1, (1, 3, 8, 8), dtype=jnp.float32)
    out2 = jax.block_until_ready(median_blur(x2, kernel_size=(5, 5)))
    ref2 = _median_blur_ref(x2, kernel_size=(5, 5))
    assert jnp.allclose(out2, ref2, atol=1e-6), "5x5 mismatch vs reference"

    print("KERNEL_OK")
</pallas_src>

<mosaic_0001>
module attributes {stable_mosaic.version = 11 : i64} {
  func.func @_median_blur_kernel(%arg0: i32, %arg1: i32, %arg2: memref<1x18x146xf32, #tpu.memory_space<vmem>>, %arg3: memref<1x8x144xf32, #tpu.memory_space<vmem>>) attributes {dimension_semantics = [#tpu.dimension_semantics<parallel>, #tpu.dimension_semantics<parallel>], iteration_bounds = array<i64: 1, 2>, scalar_prefetch = 0 : i64, scratch_operands = 0 : i64, tpu.core_type = #tpu.core_type<tc>, window_params = [{transform_indices = @transform_0, window_bounds = array<i64: 1, 18, 146>}, {transform_indices = @transform_1, window_bounds = array<i64: 1, 8, 144>}]} {
    %c8_i32 = arith.constant 8 : i32
    %0 = arith.muli %arg1, %c8_i32 : i32
    %1 = tpu.assume_multiple %0, 8 : i32
    %c0 = arith.constant 0 : index
    %2 = arith.index_cast %1 : i32 to index
    %c0_0 = arith.constant 0 : index
    %3 = vector.load %arg2[%c0, %2, %c0_0] : memref<1x18x146xf32, #tpu.memory_space<vmem>>, vector<1x10x146xf32>
    %4 = vector.shape_cast %3 : vector<1x10x146xf32> to vector<10x146xf32>
    %5 = vector.extract_strided_slice %4 {offsets = [0, 0], sizes = [8, 144], strides = [1, 1]} : vector<10x146xf32> to vector<8x144xf32>
    %6 = vector.extract_strided_slice %4 {offsets = [0, 1], sizes = [8, 144], strides = [1, 1]} : vector<10x146xf32> to vector<8x144xf32>
    %7 = vector.extract_strided_slice %4 {offsets = [0, 2], sizes = [8, 144], strides = [1, 1]} : vector<10x146xf32> to vector<8x144xf32>
    %8 = vector.extract_strided_slice %4 {offsets = [1, 0], sizes = [8, 144], strides = [1, 1]} : vector<10x146xf32> to vector<8x144xf32>
    %9 = vector.extract_strided_slice %4 {offsets = [1, 1], sizes = [8, 144], strides = [1, 1]} : vector<10x146xf32> to vector<8x144xf32>
    %10 = vector.extract_strided_slice %4 {offsets = [1, 2], sizes = [8, 144], strides = [1, 1]} : vector<10x146xf32> to vector<8x144xf32>
    %11 = vector.extract_strided_slice %4 {offsets = [2, 0], sizes = [8, 144], strides = [1, 1]} : vector<10x146xf32> to vector<8x144xf32>
    %12 = vector.extract_strided_slice %4 {offsets = [2, 1], sizes = [8, 144], strides = [1, 1]} : vector<10x146xf32> to vector<8x144xf32>
    %13 = vector.extract_strided_slice %4 {offsets = [2, 2], sizes = [8, 144], strides = [1, 1]} : vector<10x146xf32> to vector<8x144xf32>
    %14 = arith.minimumf %6, %7 : vector<8x144xf32>
    %15 = arith.maximumf %6, %7 : vector<8x144xf32>
    %16 = arith.minimumf %9, %10 : vector<8x144xf32>
    %17 = arith.maximumf %9, %10 : vector<8x144xf32>
    %18 = arith.minimumf %12, %13 : vector<8x144xf32>
    %19 = arith.maximumf %12, %13 : vector<8x144xf32>
    %20 = arith.minimumf %5, %14 : vector<8x144xf32>
    %21 = arith.maximumf %5, %14 : vector<8x144xf32>
    %22 = arith.minimumf %8, %16 : vector<8x144xf32>
    %23 = arith.maximumf %8, %16 : vector<8x144xf32>
    %24 = arith.minimumf %11, %18 : vector<8x144xf32>
    %25 = arith.maximumf %11, %18 : vector<8x144xf32>
    %26 = arith.minimumf %21, %15 : vector<8x144xf32>
    %27 = arith.maximumf %21, %15 : vector<8x144xf32>
    %28 = arith.minimumf %23, %17 : vector<8x144xf32>
    %29 = arith.maximumf %23, %17 : vector<8x144xf32>
    %30 = arith.minimumf %25, %19 : vector<8x144xf32>
    %31 = arith.maximumf %25, %19 : vector<8x144xf32>
    %32 = arith.maximumf %20, %22 : vector<8x144xf32>
    %33 = arith.minimumf %29, %31 : vector<8x144xf32>
    %34 = arith.minimumf %28, %30 : vector<8x144xf32>
    %35 = arith.maximumf %28, %30 : vector<8x144xf32>
    %36 = arith.maximumf %32, %24 : vector<8x144xf32>
    %37 = arith.maximumf %26, %34 : vector<8x144xf32>
    %38 = arith.minimumf %27, %33 : vector<8x144xf32>
    %39 = arith.minimumf %37, %35 : vector<8x144xf32>
    %40 = arith.minimumf %39, %38 : vector<8x144xf32>
    %41 = arith.maximumf %39, %38 : vector<8x144xf32>
    %42 = arith.maximumf %36, %40 : vector<8x144xf32>
    %43 = arith.minimumf %42, %41 : vector<8x144xf32>
    %c0_1 = arith.constant 0 : index
    %c0_2 = arith.constant 0 : index
    %c0_3 = arith.constant 0 : index
    %44 = vector.load %arg3[%c0_1, %c0_2, %c0_3] : memref<1x8x144xf32, #tpu.memory_space<vmem>>, vector<1x8x144xf32>
    %45 = vector.shape_cast %44 : vector<1x8x144xf32> to vector<8x144xf32>
    %46 = vector.shape_cast %43 : vector<8x144xf32> to vector<1x8x144xf32>
    tpu.vector_store %arg3[%c0_1, %c0_2, %c0_3], %46 {strides = array<i32>} : memref<1x8x144xf32, #tpu.memory_space<vmem>>, vector<1x8x144xf32>,
    return
  }
  func.func @transform_0(%arg0: i32, %arg1: i32) -> (i32, i32, i32) {
    %c0_i32 = arith.constant 0 : i32
    %c0_i32_0 = arith.constant 0 : i32
    %c0_i32_1 = arith.constant 0 : i32
    return %arg0, %c0_i32, %c0_i32_0 : i32, i32, i32
  }
  func.func @transform_1(%arg0: i32, %arg1: i32) -> (i32, i32, i32) {
    %c0_i32 = arith.constant 0 : i32
    %c0_i32_0 = arith.constant 0 : i32
    return %arg0, %arg1, %c0_i32 : i32, i32, i32
  }
}

</mosaic_0001>

<llo_original>
// kernel: tpu_custom_call.1
$region0: #{tpu_custom_call.1}
  #allocation0 [shape = 'u32[]', space=smem, size = 0x4, offset = 0x4, fixed_abs, tag = 'smem constant byte address 0x4 - core index']
  #allocation1 [shape = 'u32[144,128]{1,0:T(1,128)}', space=vmem, size = 0x12000, scoped, tag = 'internal scratch']
  %s0 = inlined_call_operand.vmem [shape: f32[1,18,146], index: 0, kind: input, shape index: {}]
  %s1 = inlined_call_operand.hbm [shape: f32[1,16,144], index: 1, kind: output, shape index: {}]
  %s2 = sld [smem:[#allocation0]]
  $region37: #{tpu_custom_call.1} parent=0
    _
  %s4 = ssub.s32 1, %s2
  %s5 = scalar_select 0, %s4, %s2
  $region1: #{tpu_custom_call.1} parent=0
    #allocation2 [shape = 'u8[16384]{0}', space=vmem, size = 0x4000, scoped, tag = 'output window, operand 0']
    #allocation3 [shape = 's32[2]{0}', space=sflag, size = 0x8, scoped, tag = 'scoped memory for tpu_custom_call.1']
    %6 = vsyncpa [#allocation3], 0
    %s7 = scalar_lea.sflag [#allocation3], 1
    %8 = vsyncpa %s7, 0
    loop: start=0, step=1, limit=4
    $region2: #{tpu_custom_call.1} parent=1 // loop_pre_header
      _
    $region3: #{tpu_custom_call.1} parent=1 // loop_header
      %s10 = sphi 0, %s14
      %p11 = scmp.ge.s32.totalorder %s10, 4
      %s17 = sphi 0, %s29
      %s18 = sphi 0, %s25
      %s19 = sphi 0, %s17
      %s20 = sphi 0, %s18
      %s21 = sphi 0, %s19
      %s22 = sphi 0, %s20
      %s32 = sphi 0, %s34
      %s35 = sphi 0, %s32
      %s36 = sphi 0, %s35
      %s52 = sphi 0, %s36
      %s60 = sphi 0, %s62
      %s63 = sphi 0, %s60
      %s64 = sphi 0, %s63
      %s80 = sphi 0, %s64
    $region4: #{tpu_custom_call.1} parent=1 // loop_header_branch
      %13 = sbr.rel (%p11) target = $region8
    $region5: #{tpu_custom_call.1} parent=1 // loop_body
      %s15 = ssub.s32 %s10, 1
      %s16 = ssub.s32 %s10, 2
      %s23 = sadd.s32 1, %s18
      %p24 = scmp.ge.s32.totalorder %s23, 2
      %s25 = scalar_select %p24, 0, %s23
      %s26 = sadd.s32 1, %s17
      %s27 = scalar_select %p24, %s26, %s17
      %p28 = scmp.ge.s32.totalorder %s27, 1
      %s29 = scalar_select %p28, 0, %s27
      %s30 = ssub.s32 %s17, %s29
      %p31 = scmp.eq.s32.totalorder %s30, 0
      %s33 = sadd.s32 %s32, 1
      %s34 = scalar_select %p31, %s32, %s33
      %p37 = pneg %p31
      %p38 = scmp.eq.s32.totalorder %s10, 1
      %p39 = por %p37, %p38
      %p40 = scmp.ne.s32.totalorder %s32, %s35
      %p41 = scmp.eq.s32.totalorder %s10, 0
      %p42 = por %p40, %p41
      %p43 = scmp.ne.s32.totalorder %s32, %s35
      %p44 = scmp.eq.s32.totalorder %s15, 1
      %p45 = por %p43, %p44
      %p46 = scmp.ne.s32.totalorder %s35, %s36
      %p47 = scmp.eq.s32.totalorder %s15, 0
      %p48 = por %p46, %p47
      %p49 = scmp.ne.s32.totalorder %s35, %s36
      %p50 = scmp.eq.s32.totalorder %s16, 1
      %p51 = por %p49, %p50
      %p53 = scmp.ne.s32.totalorder %s36, %s52
      %p54 = scmp.eq.s32.totalorder %s16, 0
      %p55 = por %p53, %p54
      %s56 = ssub.s32 %s17, %s29
      %s57 = ssub.s32 %s18, %s25
      %s58 = sor.u32 %s56, %s57
      %p59 = scmp.eq.s32.totalorder %s58, 0
      %s61 = sadd.s32 %s60, 1
      %s62 = scalar_select %p59, %s60, %s61
      %p65 = pneg %p59
      %p66 = scmp.eq.s32.totalorder %s10, 1
      %p67 = por %p65, %p66
      %p68 = scmp.ne.s32.totalorder %s60, %s63
      %p69 = scmp.eq.s32.totalorder %s10, 0
      %p70 = por %p68, %p69
      %p71 = scmp.ne.s32.totalorder %s60, %s63
      %p72 = scmp.eq.s32.totalorder %s15, 1
      %p73 = por %p71, %p72
      %p74 = scmp.ne.s32.totalorder %s63, %s64
      %p75 = scmp.eq.s32.totalorder %s15, 0
      %p76 = por %p74, %p75
      %p77 = scmp.ne.s32.totalorder %s63, %s64
      %p78 = scmp.eq.s32.totalorder %s16, 1
      %p79 = por %p77, %p78
      %p81 = scmp.ne.s32.totalorder %s64, %s80
      %p82 = scmp.eq.s32.totalorder %s16, 0
      %p83 = por %p81, %p82
      %p84 = scmp.le.s32.totalorder 1, %s10
      %p85 = scmp.lt.s32.totalorder %s10, 3
      %p86 = pnand %p84, %p85
      %p87 = pneg %p86
      // Predicated region
      $region9: #{tpu_custom_call.1} parent=5 // pred_check
        _
      $region10: #{tpu_custom_call.1} parent=5 // pred_check_branch
        %89 = sbr.rel (%p86) target = $region12
      $region11: #{tpu_custom_call.1} parent=5 // pred_region
        %s90 = ssub.s32 %s10, 1
        // Predicated region
        $region13: #{tpu_custom_call.1} parent=11 // pred_check
          %p91 = pneg %p48
        $region14: #{tpu_custom_call.1} parent=11 // pred_check_branch
          %93 = sbr.rel (%p91) target = $region16
        $region15: #{tpu_custom_call.1} parent=11 // pred_region
          %p94 = scmp.lt.s32.totalorder %s19, 0
          %s95 = scalar_select %p94, %s19, 0
          %s96 = smul.addr %s95, 6
          %s97 = smul.addr %s96, 8
          %s98 = scalar_lea.vmem %s0, %s97
        $region16: #{tpu_custom_call.1} parent=11 // pred_fallthru
          _
      $region12: #{tpu_custom_call.1} parent=5 // pred_fallthru
        _
      %p99 = scmp.lt.s32.totalorder %s10, 2
      // Predicated region
      $region17: #{tpu_custom_call.1} parent=5 // pred_check
        %p100 = pneg %p99
      $region18: #{tpu_custom_call.1} parent=5 // pred_check_branch
        %102 = sbr.rel (%p100) target = $region20
      $region19: #{tpu_custom_call.1} parent=5 // pred_region
        _
      $region20: #{tpu_custom_call.1} parent=5 // pred_fallthru
        _
      %p103 = scmp.le.s32.totalorder 1, %s10
      %p104 = scmp.lt.s32.totalorder %s10, 3
      %p105 = pnand %p103, %p104
      %p106 = pneg %p105
      // Predicated region
      $region21: #{tpu_custom_call.1} parent=5 // pred_check
        _
      $region22: #{tpu_custom_call.1} parent=5 // pred_check_branch
        %108 = sbr.rel (%p105) target = $region24
      $region23: #{tpu_custom_call.1} parent=5 // pred_region
        %s109 = ssub.s32 %s10, 1
        %p110 = scmp.lt.s32.totalorder %s19, 0
        %s111 = scalar_select %p110, %s19, 0
        %s112 = smul.addr %s111, 6
        %s113 = smul.addr %s112, 8
        %s114 = scalar_lea.vmem %s0, %s113
        %p115 = pneg %p48
        %p116 = pneg %p45
        %p117 = pneg %p76
        %p118 = pneg %p73
        %s119 = sand.u32 %s63, 1
        %s120 = scalar_lea.sflag [#allocation3], %s119
        %s121 = sand.u32 %s63, 1
        %s122 = smul.addr %s121, 16
        %s123 = scalar_lea.vmem [#allocation2], %s122
        %p124 = scmp.lt.s32.totalorder %s19, 0
        %s125 = scalar_select %p124, %s19, 0
        %s126 = smul.addr %s125, 6
        %s127 = smul.addr %s126, 8
        %s128 = scalar_lea.vmem %s0, %s127
        %s129 = smul.u32 %s20, 8
        %s130 = sshra.s32 %s129, 3
        %s131 = sand.u32 %s129, 7
        %s132 = smul.u32 %s130, 2
        %s133 = smul.addr %s132, 8
        %s134 = scalar_lea.vmem %s128, %s133
        %v135 = vld [vmem:[%s134] sm:$0xff]
        %v136 = vld [vmem:[%s134 + $0x8] sm:$0xff]
        %v137 = vld [vmem:[%s134 + $0x10] sm:$0x3]
        %v138 = vld [vmem:[%s134 + $0x18] sm:$0x3]
        %141 = vrot.lane.b32.xlu0 %v135, 127
        %v142 = vpop.permute.xlu0 %141
        %143 = vrot.lane.b32.xlu0 %v136, 127
        %v144 = vpop.permute.xlu0 %143
        %vm145 = vcmask 1039360
        %v146 = vsel %vm145, %v142, %v144
        %v149 = vmin.f32 %v135, %v146
        %v150 = vmin.f32 %v136, %v144
        %v151 = vmax.f32 %v135, %v146
        %v152 = vmax.f32 %v136, %v144
        %155 = vrot.lane.b32.xlu0 %v137, 127
        %v156 = vpop.permute.xlu0 %155
        %157 = vrot.lane.b32.xlu0 %v138, 127
        %v158 = vpop.permute.xlu0 %157
        %v159 = vsel %vm145, %v156, %v158
        %v162 = vmin.f32 %v137, %v159
        %v163 = vmin.f32 %v138, %v158
        %v164 = vmax.f32 %v137, %v159
        %v165 = vmax.f32 %v138, %v158
        %168 = vrot.lane.b32.xlu0 %v149, 127
        %v169 = vpop.permute.xlu0 %168
        %170 = vrot.lane.b32.xlu0 %v150, 127
        %v171 = vpop.permute.xlu0 %170
        %v172 = vsel %vm145, %v169, %v171
        %v175 = vmin.f32 %v135, %v172
        %v176 = vmin.f32 %v136, %v171
        %v177 = vmax.f32 %v135, %v172
        %v178 = vmax.f32 %v136, %v171
        %181 = vrot.lane.b32.xlu0 %v162, 127
        %v182 = vpop.permute.xlu0 %181
        %183 = vrot.lane.b32.xlu0 %v163, 127
        %v184 = vpop.permute.xlu0 %183
        %v185 = vsel %vm145, %v182, %v184
        %v188 = vmin.f32 %v137, %v185
        %v189 = vmin.f32 %v138, %v184
        %v190 = vmax.f32 %v137, %v185
        %v191 = vmax.f32 %v138, %v184
        %194 = vrot.lane.b32.xlu0 %v151, 127
        %v195 = vpop.permute.xlu0 %194
        %196 = vrot.lane.b32.xlu0 %v152, 127
        %v197 = vpop.permute.xlu0 %196
        %v198 = vsel %vm145, %v195, %v197
        %v201 = vmin.f32 %v177, %v198
        %v202 = vmin.f32 %v178, %v197
        %v203 = vmax.f32 %v177, %v198
        %v204 = vmax.f32 %v178, %v197
        %207 = vrot.lane.b32.xlu0 %v164, 127
        %v208 = vpop.permute.xlu0 %207
        %209 = vrot.lane.b32.xlu0 %v165, 127
        %v210 = vpop.permute.xlu0 %209
        %v211 = vsel %vm145, %v208, %v210
        %v214 = vmin.f32 %v190, %v211
        %v215 = vmin.f32 %v191, %v210
        %v216 = vmax.f32 %v190, %v211
        %v217 = vmax.f32 %v191, %v210
        %vm222 = vcmask 1046528
        %v223 = vrot.slane %v175, 1
        %v224 = vrot.slane %v188, 1
        %v225 = vsel %vm222, %v223, %v224
        %v226 = vrot.slane %v176, 1
        %v227 = vrot.slane %v189, 1
        %v228 = vsel %vm222, %v226, %v227
        %v231 = vmax.f32 %v175, %v225
        %v232 = vmax.f32 %v176, %v228
        %v237 = vrot.slane %v203, 1
        %v238 = vrot.slane %v216, 1
        %v239 = vsel %vm222, %v237, %v238
        %v240 = vrot.slane %v204, 1
        %v241 = vrot.slane %v217, 1
        %v242 = vsel %vm222, %v240, %v241
        %v247 = vmin.f32 %v203, %v239
        %v248 = vmin.f32 %v204, %v242
        %v249 = vmin.f32 %v216, %v238
        %v250 = vmin.f32 %v217, %v241
        %v255 = vrot.slane %v201, 1
        %v256 = vrot.slane %v214, 1
        %v257 = vsel %vm222, %v255, %v256
        %v258 = vrot.slane %v202, 1
        %v259 = vrot.slane %v215, 1
        %v260 = vsel %vm222, %v258, %v259
        %v265 = vmin.f32 %v201, %v257
        %v266 = vmin.f32 %v202, %v260
        %v267 = vmin.f32 %v214, %v256
        %v268 = vmin.f32 %v215, %v259
        %v269 = vmax.f32 %v201, %v257
        %v270 = vmax.f32 %v202, %v260
        %v271 = vmax.f32 %v214, %v256
        %v272 = vmax.f32 %v215, %v259
        %vm273 = vcmask 1045504
        %v274 = vrot.slane %v175, 2
        %v275 = vrot.slane %v188, 2
        %v276 = vsel %vm273, %v274, %v275
        %v277 = vrot.slane %v176, 2
        %v278 = vrot.slane %v189, 2
        %v279 = vsel %vm273, %v277, %v278
        %v282 = vmax.f32 %v231, %v276
        %v283 = vmax.f32 %v232, %v279
        %v288 = vrot.slane %v265, 1
        %v289 = vrot.slane %v267, 1
        %v290 = vsel %vm222, %v288, %v289
        %v291 = vrot.slane %v266, 1
        %v292 = vrot.slane %v268, 1
        %v293 = vsel %vm222, %v291, %v292
        %v296 = vmax.f32 %v201, %v290
        %v297 = vmax.f32 %v202, %v293
        %v302 = vrot.slane %v247, 1
        %v303 = vrot.slane %v249, 1
        %v304 = vsel %vm222, %v302, %v303
        %v305 = vrot.slane %v248, 1
        %v306 = vrot.slane %v250, 1
        %v307 = vsel %vm222, %v305, %v306
        %v310 = vmin.f32 %v203, %v304
        %v311 = vmin.f32 %v204, %v307
        %v316 = vrot.slane %v269, 1
        %v317 = vrot.slane %v271, 1
        %v318 = vsel %vm222, %v316, %v317
        %v319 = vrot.slane %v270, 1
        %v320 = vrot.slane %v272, 1
        %v321 = vsel %vm222, %v319, %v320
        %v324 = vmin.f32 %v296, %v318
        %v325 = vmin.f32 %v297, %v321
        %v326 = vmin.f32 %v324, %v310
        %v327 = vmin.f32 %v325, %v311
        %v328 = vmax.f32 %v324, %v310
        %v329 = vmax.f32 %v325, %v311
        %v330 = vmax.f32 %v282, %v326
        %v331 = vmax.f32 %v283, %v327
        %v332 = vmin.f32 %v330, %v328
        %v333 = vmin.f32 %v331, %v329
        %334 = vst [vmem:[%s123] sm:$0xff] %v332
        %vm335 = vcmask 130048
        %336 = vst.msk [vmem:[%s123 + $0x8] sm:$0xff] %vm335, %v333
        %s337 = sand.u32 %s63, 1
        %s338 = scalar_lea.sflag [#allocation3], %s337
        %s339 = sand.u32 %s63, 1
        %s340 = smul.addr %s339, 16
        %s341 = scalar_lea.vmem [#allocation2], %s340
        // Predicated region
        $region25: #{tpu_custom_call.1} parent=23 // pred_check
          %p342 = pneg %p73
        $region26: #{tpu_custom_call.1} parent=23 // pred_check_branch
          %344 = sbr.rel (%p342) target = $region28
        $region27: #{tpu_custom_call.1} parent=23 // pred_region
          %s346 = ssub.s32 256, 256
          %347 = vsyncadd %s338, %s346
          %s348 = smul.addr %s20, 2
          %s349 = smul.addr %s19, 4
          %s350 = sadd.s32 %s348, %s349
          %s351 = smul.addr %s350, 128
          %s352 = scalar_lea.hbm %s1, %s351
          %s354 = sshll.u32 %s341, 4
          %s355 = int_to_ptr.vmem [resolvable:$true] %s354
          %357 = dma.vmem_to_hbm [thread:$0]  %s355, 256, %s352, %s338
        $region28: #{tpu_custom_call.1} parent=23 // pred_fallthru
          _
      $region24: #{tpu_custom_call.1} parent=5 // pred_fallthru
        _
      %p358 = scmp.le.s32.totalorder 2, %s10
      // Predicated region
      $region29: #{tpu_custom_call.1} parent=5 // pred_check
        %p359 = pneg %p358
      $region30: #{tpu_custom_call.1} parent=5 // pred_check_branch
        %361 = sbr.rel (%p359) target = $region32
      $region31: #{tpu_custom_call.1} parent=5 // pred_region
        %s362 = ssub.s32 %s10, 2
        // Predicated region
        $region33: #{tpu_custom_call.1} parent=31 // pred_check
          %p363 = pneg %p79
        $region34: #{tpu_custom_call.1} parent=31 // pred_check_branch
          %365 = sbr.rel (%p363) target = $region36
        $region35: #{tpu_custom_call.1} parent=31 // pred_region
          %s366 = sand.u32 %s64, 1
          %s367 = scalar_lea.sflag [#allocation3], %s366
          %s368 = sand.u32 %s64, 1
          %s369 = smul.addr %s368, 16
          %s370 = scalar_lea.vmem [#allocation2], %s369
          %371 = dma.done %s367, 256
        $region36: #{tpu_custom_call.1} parent=31 // pred_fallthru
          _
      $region32: #{tpu_custom_call.1} parent=5 // pred_fallthru
        _
    $region6: #{tpu_custom_call.1} parent=1 // loop_footer
      %s14 = sadd.s32 1, %s10
    $region7: #{tpu_custom_call.1} parent=1 // loop_footer_branch
      %9 = sbr.rel target = $region3
    $region8: #{tpu_custom_call.1} parent=1 // loop_exit
      _
    %372 = vsyncpa [#allocation3], 1
    %s373 = scalar_lea.sflag [#allocation3], 1
    %374 = vsyncpa %s373, 1

</llo_original>
